<compile_context>
chip_gen: v7x
topology: tpu7x:2x2x1
jax: 0.10.0
libtpu: 0.0.40
codegen_flags: <defaults>
</compile_context>

<pallas_src>
import jax
import jax.numpy as jnp
from jax.experimental import pallas as pl
from jax.experimental.pallas import tpu as pltpu


# ---------------------------------------------------------------------------
# Single fused kernel: in-kernel lookup -> unrolled LSTM recurrence -> fused FC heads.
# PyTorch gate order along 4H: [i, f, g, o].
# ---------------------------------------------------------------------------
def _fused_receiver_kernel(ids_ref, comb_ref, bias_ref, whh_ref, fcw_ref, fcb_ref,
                           out_ref, xp_scratch):
    V, G = comb_ref.shape          # vocab, 4H
    H = whh_ref.shape[0]
    B = out_ref.shape[0]
    TB = ids_ref.shape[0]          # T * B (time-major ids)
    T = TB // B

    # ---- Input projection as an in-kernel lookup --------------------------------------
    # ids are time-major (row = t*B + b).  bf16 iota-compare one-hot + one lane-dense bf16
    # MXU dot against comb = embedding @ W_ih^T; bias (b_ih + b_hh) added in f32.
    ids = ids_ref[...]                                               # (T*B, 1) int32
    iota_v = jax.lax.broadcasted_iota(jnp.int32, (TB, V), 1)
    onehot = (ids == iota_v).astype(jnp.bfloat16)                    # (T*B, V) bf16, exact
    xp = jnp.dot(onehot, comb_ref[...],
                 preferred_element_type=jnp.float32) + bias_ref[...]
    xp_scratch[...] = xp                                             # (T*B, 4H) f32, time-major

    # ---- Unrolled LSTM recurrence ------------------------------------------------------
    whh = whh_ref[...]                                               # (H, 4H) bf16, hoisted
    h = jnp.zeros((B, H), jnp.float32)
    c = jnp.zeros((B, H), jnp.float32)
    for t in range(T):                                               # T is small & static
        x_t = xp_scratch[t * B:(t + 1) * B, :]                       # (B, 4H), 8-sublane aligned
        gates = x_t + jnp.dot(h.astype(jnp.bfloat16), whh,
                              preferred_element_type=jnp.float32)    # (B, 4H) f32
        sig = jax.nn.sigmoid(gates)                                  # one EUP pass over full 4H
        tnh = jnp.tanh(gates)
        i_g = sig[:, 0 * H:1 * H]
        f_g = sig[:, 1 * H:2 * H]
        g_g = tnh[:, 2 * H:3 * H]
        o_g = sig[:, 3 * H:4 * H]
        c = f_g * c + i_g * g_g
        h = o_g * jnp.tanh(c)

    # ---- All FC heads fused into one lane-dense (128-padded) matmul --------------------
    out_ref[...] = jnp.dot(h.astype(jnp.bfloat16), fcw_ref[...],
                           preferred_element_type=jnp.float32) + fcb_ref[...]


# ---------------------------------------------------------------------------
# Parameters (deterministic init, mirrors the PyTorch __init__ shapes).
# ---------------------------------------------------------------------------
def init_params(key, num_classes_by_model, vocab_size, embedding_size, num_hidden):
    n_heads = len(num_classes_by_model)
    keys = jax.random.split(key, 5 + 2 * n_heads)
    k_lstm = 1.0 / jnp.sqrt(jnp.float32(num_hidden))

    params = {
        # nn.init.normal_(embedding, 0.0, 0.1)
        "embedding": 0.1 * jax.random.normal(
            keys[0], (vocab_size, embedding_size), jnp.float32),
        # LSTM weights stored transposed:  W_ih^T (E, 4H), W_hh^T (H, 4H)
        "w_ih_t": jax.random.uniform(
            keys[1], (embedding_size, 4 * num_hidden), jnp.float32, -k_lstm, k_lstm),
        "w_hh_t": jax.random.uniform(
            keys[2], (num_hidden, 4 * num_hidden), jnp.float32, -k_lstm, k_lstm),
        "b_ih": jax.random.uniform(
            keys[3], (4 * num_hidden,), jnp.float32, -k_lstm, k_lstm),
        "b_hh": jax.random.uniform(
            keys[4], (4 * num_hidden,), jnp.float32, -k_lstm, k_lstm),
        "num_hidden": num_hidden,
        "fc": [],
    }
    k_fc = 1.0 / jnp.sqrt(jnp.float32(num_hidden))
    for i, n_cls in enumerate(num_classes_by_model):
        w_t = jax.random.uniform(
            keys[5 + 2 * i], (num_hidden, n_cls), jnp.float32, -k_fc, k_fc)
        b = jax.random.uniform(
            keys[6 + 2 * i], (n_cls,), jnp.float32, -k_fc, k_fc)
        params["fc"].append((w_t, b))
    return params


# ---------------------------------------------------------------------------
# One-time parameter fusion (plain JAX, parameter-only — not per-token work).
# comb is computed in f32 and only cast to bf16 at the kernel boundary.
# ---------------------------------------------------------------------------
def fuse_params(params):
    H = params["num_hidden"]
    comb_f32 = (params["embedding"] @ params["w_ih_t"]).astype(jnp.float32)   # (V, 4H)
    bias = (params["b_ih"] + params["b_hh"]).reshape(1, 4 * H).astype(jnp.float32)

    # Concatenate all FC heads into one weight/bias, zero-padded to a 128-lane multiple.
    num_classes = [int(w.shape[1]) for (w, _) in params["fc"]]
    c_tot = sum(num_classes)
    c_pad = max(128, ((c_tot + 127) // 128) * 128)
    fcw = jnp.zeros((H, c_pad), jnp.float32)
    fcb = jnp.zeros((1, c_pad), jnp.float32)
    off = 0
    for (w_t, b) in params["fc"]:
        n = int(w_t.shape[1])
        fcw = fcw.at[:, off:off + n].set(w_t.astype(jnp.float32))
        fcb = fcb.at[:, off:off + n].set(b.astype(jnp.float32))
        off += n

    return {
        "comb": comb_f32.astype(jnp.bfloat16),            # (V, 4H)  bf16 MXU operand
        "bias": bias,                                      # (1, 4H)  f32
        "whh": params["w_hh_t"].astype(jnp.bfloat16),      # (H, 4H)  bf16, gate order [i,f,g,o]
        "fcw": fcw.astype(jnp.bfloat16),                   # (H, c_pad) bf16, padded cols stay 0
        "fcb": fcb,                                        # (1, c_pad) f32
        "num_hidden": H, "num_classes": num_classes, "c_pad": c_pad,
    }


# ---------------------------------------------------------------------------
# Forward pass: one gridless pallas_call, whole-array VMEM blocks.
# ---------------------------------------------------------------------------
def messages_receiver_forward(fused, tokens):
    B, T = tokens.shape
    H = fused["num_hidden"]
    G = 4 * H
    c_pad = fused["c_pad"]

    # Time-major ids (row = t*B + b): the per-timestep (B,4H) slab of the in-kernel projection is
    # then a contiguous, sublane-aligned slice of the VMEM scratch. Wrapper-side layout plumbing.
    ids_tb = jnp.transpose(tokens.astype(jnp.int32)).reshape(T * B, 1)

    vmem = pltpu.MemorySpace.VMEM
    out_pad = pl.pallas_call(
        _fused_receiver_kernel,
        out_shape=jax.ShapeDtypeStruct((B, c_pad), jnp.float32),
        in_specs=[
            pl.BlockSpec(memory_space=vmem),   # token ids, time-major (T*B, 1) int32
            pl.BlockSpec(memory_space=vmem),   # comb = embedding @ W_ih^T   (V, 4H) bf16
            pl.BlockSpec(memory_space=vmem),   # b_ih + b_hh                 (1, 4H) f32
            pl.BlockSpec(memory_space=vmem),   # W_hh^T                      (H, 4H) bf16
            pl.BlockSpec(memory_space=vmem),   # fused FC weights            (H, c_pad) bf16
            pl.BlockSpec(memory_space=vmem),   # fused FC biases             (1, c_pad) f32
        ],
        out_specs=pl.BlockSpec(memory_space=vmem),
        scratch_shapes=[pltpu.VMEM((T * B, G), jnp.float32)],   # time-major xp
    )(ids_tb, fused["comb"], fused["bias"], fused["whh"], fused["fcw"], fused["fcb"])

    outs = []
    off = 0
    for n in fused["num_classes"]:
        outs.append(out_pad[:, off:off + n])
        off += n
    return outs


# ---------------------------------------------------------------------------
# Pure-JAX f32 reference (mirrors the PyTorch module, training one-hot branch).
# ---------------------------------------------------------------------------
def reference_forward(params, messages_onehot):
    H = params["num_hidden"]
    B = messages_onehot.shape[0]
    emb = jnp.einsum("btv,ve->bte", messages_onehot, params["embedding"])
    xp = jnp.einsum("bte,eg->btg", emb, params["w_ih_t"]) + params["b_ih"] + params["b_hh"]

    def step(carry, x_t):
        h, c = carry
        gates = x_t + h @ params["w_hh_t"]
        i_g = jax.nn.sigmoid(gates[:, 0 * H:1 * H])
        f_g = jax.nn.sigmoid(gates[:, 1 * H:2 * H])
        g_g = jnp.tanh(gates[:, 2 * H:3 * H])
        o_g = jax.nn.sigmoid(gates[:, 3 * H:4 * H])
        c = f_g * c + i_g * g_g
        h = o_g * jnp.tanh(c)
        return (h, c), None

    init = (jnp.zeros((B, H), jnp.float32), jnp.zeros((B, H), jnp.float32))
    (h, _), _ = jax.lax.scan(step, init, jnp.swapaxes(xp, 0, 1))
    return [h @ w_t + b for (w_t, b) in params["fc"]]


if __name__ == "__main__":
    B, T, V, E, H = 8, 8, 25, 32, 32
    num_classes_by_model = [10, 7, 5]

    key = jax.random.PRNGKey(0)
    k_par, k_tok = jax.random.split(key)
    params = init_params(k_par, num_classes_by_model, V, E, H)
    fused = fuse_params(params)

    tokens = jax.random.randint(k_tok, (B, T), 0, V)

    out = messages_receiver_forward(fused, tokens)
    out = [jax.block_until_ready(o) for o in out]

    messages = jax.nn.one_hot(tokens, V, dtype=jnp.float32)   # hard one-hot == id lookup
    ref = reference_forward(params, messages)
    for o, r, n_cls in zip(out, ref, num_classes_by_model):
        assert o.shape == (B, n_cls), o.shape
        assert bool(jnp.all(jnp.isfinite(o)))
        # bf16 MXU operands (comb, w_hh, fcw, h) vs f32 reference -> widened tolerance.
        err = float(jnp.max(jnp.abs(o - r)))
        assert jnp.allclose(o, r, atol=5e-2, rtol=5e-2), err

    print("KERNEL_OK")
</pallas_src>

<mosaic_0001>
module attributes {stable_mosaic.version = 11 : i64} {
  func.func @_fused_receiver_kernel(%arg0: memref<64x1xi32, #tpu.memory_space<vmem>>, %arg1: memref<25x128xbf16, #tpu.memory_space<vmem>>, %arg2: memref<1x128xf32, #tpu.memory_space<vmem>>, %arg3: memref<32x128xbf16, #tpu.memory_space<vmem>>, %arg4: memref<32x128xbf16, #tpu.memory_space<vmem>>, %arg5: memref<1x128xf32, #tpu.memory_space<vmem>>, %arg6: memref<8x128xf32, #tpu.memory_space<vmem>>, %arg7: memref<64x128xf32, #tpu.memory_space<vmem>>) attributes {dimension_semantics = [], scalar_prefetch = 0 : i64, scratch_operands = 1 : i64, tpu.core_type = #tpu.core_type<tc>} {
    %c0 = arith.constant 0 : index
    %c0_0 = arith.constant 0 : index
    %0 = vector.load %arg0[%c0, %c0_0] : memref<64x1xi32, #tpu.memory_space<vmem>>, vector<64x1xi32>
    %1 = tpu.iota {dimensions = array<i32: 1>} : vector<64x25xi32>
    %2 = vector.broadcast %0 : vector<64x1xi32> to vector<64x25xi32>
    %3 = arith.cmpi eq, %2, %1 : vector<64x25xi32>
    %4 = arith.extui %3 : vector<64x25xi1> to vector<64x25xi32>
    %5 = arith.sitofp %4 : vector<64x25xi32> to vector<64x25xf32>
    %6 = arith.truncf %5 : vector<64x25xf32> to vector<64x25xbf16>
    %c0_1 = arith.constant 0 : index
    %c0_2 = arith.constant 0 : index
    %7 = vector.load %arg1[%c0_1, %c0_2] : memref<25x128xbf16, #tpu.memory_space<vmem>>, vector<25x128xbf16>
    %cst = arith.constant dense<0.000000e+00> : vector<64x128xf32>
    %8 = tpu.matmul %6, %7, %cst {dimension_numbers = #tpu.dot_dimension_numbers<[1], [0], [0], [1], [0, 0, 1, 1], [], []>} : vector<64x25xbf16>, vector<25x128xbf16>, vector<64x128xf32> -> vector<64x128xf32>
    %c0_3 = arith.constant 0 : index
    %c0_4 = arith.constant 0 : index
    %9 = vector.load %arg2[%c0_3, %c0_4] : memref<1x128xf32, #tpu.memory_space<vmem>>, vector<1x128xf32>
    %10 = vector.broadcast %9 : vector<1x128xf32> to vector<64x128xf32>
    %11 = arith.addf %8, %10 : vector<64x128xf32>
    %c0_5 = arith.constant 0 : index
    %c0_6 = arith.constant 0 : index
    %12 = vector.load %arg7[%c0_5, %c0_6] : memref<64x128xf32, #tpu.memory_space<vmem>>, vector<64x128xf32>
    tpu.vector_store %arg7[%c0_5, %c0_6], %11 {strides = array<i32>} : memref<64x128xf32, #tpu.memory_space<vmem>>, vector<64x128xf32>,
    %c0_7 = arith.constant 0 : index
    %c0_8 = arith.constant 0 : index
    %13 = vector.load %arg3[%c0_7, %c0_8] : memref<32x128xbf16, #tpu.memory_space<vmem>>, vector<32x128xbf16>
    %cst_9 = arith.constant 0.000000e+00 : f32
    %14 = vector.broadcast %cst_9 : f32 to vector<8x32xf32>
    %cst_10 = arith.constant 0.000000e+00 : f32
    %15 = vector.broadcast %cst_10 : f32 to vector<8x32xf32>
    %c0_11 = arith.constant 0 : index
    %c0_12 = arith.constant 0 : index
    %16 = vector.load %arg7[%c0_11, %c0_12] : memref<64x128xf32, #tpu.memory_space<vmem>>, vector<8x128xf32>
    %17 = arith.truncf %14 : vector<8x32xf32> to vector<8x32xbf16>
    %cst_13 = arith.constant dense<0.000000e+00> : vector<8x128xf32>
    %18 = tpu.matmul %17, %13, %cst_13 {dimension_numbers = #tpu.dot_dimension_numbers<[1], [0], [0], [1], [0, 0, 1, 1], [], []>} : vector<8x32xbf16>, vector<32x128xbf16>, vector<8x128xf32> -> vector<8x128xf32>
    %19 = arith.addf %16, %18 : vector<8x128xf32>
    %20 = arith.negf %19 : vector<8x128xf32>
    %21 = math.exp %20 : vector<8x128xf32>
    %cst_14 = arith.constant 1.000000e+00 : f32
    %22 = vector.broadcast %cst_14 : f32 to vector<8x128xf32>
    %23 = arith.addf %22, %21 : vector<8x128xf32>
    %24 = arith.divf %22, %23 : vector<8x128xf32>
    %25 = math.tanh %19 : vector<8x128xf32>
    %26 = vector.extract_strided_slice %24 {offsets = [0, 0], sizes = [8, 32], strides = [1, 1]} : vector<8x128xf32> to vector<8x32xf32>
    %27 = vector.extract_strided_slice %24 {offsets = [0, 32], sizes = [8, 32], strides = [1, 1]} : vector<8x128xf32> to vector<8x32xf32>
    %28 = vector.extract_strided_slice %25 {offsets = [0, 64], sizes = [8, 32], strides = [1, 1]} : vector<8x128xf32> to vector<8x32xf32>
    %29 = vector.extract_strided_slice %24 {offsets = [0, 96], sizes = [8, 32], strides = [1, 1]} : vector<8x128xf32> to vector<8x32xf32>
    %30 = arith.mulf %27, %15 : vector<8x32xf32>
    %31 = arith.mulf %26, %28 : vector<8x32xf32>
    %32 = arith.addf %30, %31 : vector<8x32xf32>
    %33 = math.tanh %32 : vector<8x32xf32>
    %34 = arith.mulf %29, %33 : vector<8x32xf32>
    %c8 = arith.constant 8 : index
    %c0_15 = arith.constant 0 : index
    %35 = vector.load %arg7[%c8, %c0_15] : memref<64x128xf32, #tpu.memory_space<vmem>>, vector<8x128xf32>
    %36 = arith.truncf %34 : vector<8x32xf32> to vector<8x32xbf16>
    %cst_16 = arith.constant dense<0.000000e+00> : vector<8x128xf32>
    %37 = tpu.matmul %36, %13, %cst_16 {dimension_numbers = #tpu.dot_dimension_numbers<[1], [0], [0], [1], [0, 0, 1, 1], [], []>} : vector<8x32xbf16>, vector<32x128xbf16>, vector<8x128xf32> -> vector<8x128xf32>
    %38 = arith.addf %35, %37 : vector<8x128xf32>
    %39 = arith.negf %38 : vector<8x128xf32>
    %40 = math.exp %39 : vector<8x128xf32>
    %cst_17 = arith.constant 1.000000e+00 : f32
    %41 = vector.broadcast %cst_17 : f32 to vector<8x128xf32>
    %42 = arith.addf %41, %40 : vector<8x128xf32>
    %43 = arith.divf %41, %42 : vector<8x128xf32>
    %44 = math.tanh %38 : vector<8x128xf32>
    %45 = vector.extract_strided_slice %43 {offsets = [0, 0], sizes = [8, 32], strides = [1, 1]} : vector<8x128xf32> to vector<8x32xf32>
    %46 = vector.extract_strided_slice %43 {offsets = [0, 32], sizes = [8, 32], strides = [1, 1]} : vector<8x128xf32> to vector<8x32xf32>
    %47 = vector.extract_strided_slice %44 {offsets = [0, 64], sizes = [8, 32], strides = [1, 1]} : vector<8x128xf32> to vector<8x32xf32>
    %48 = vector.extract_strided_slice %43 {offsets = [0, 96], sizes = [8, 32], strides = [1, 1]} : vector<8x128xf32> to vector<8x32xf32>
    %49 = arith.mulf %46, %32 : vector<8x32xf32>
    %50 = arith.mulf %45, %47 : vector<8x32xf32>
    %51 = arith.addf %49, %50 : vector<8x32xf32>
    %52 = math.tanh %51 : vector<8x32xf32>
    %53 = arith.mulf %48, %52 : vector<8x32xf32>
    %c16 = arith.constant 16 : index
    %c0_18 = arith.constant 0 : index
    %54 = vector.load %arg7[%c16, %c0_18] : memref<64x128xf32, #tpu.memory_space<vmem>>, vector<8x128xf32>
    %55 = arith.truncf %53 : vector<8x32xf32> to vector<8x32xbf16>
    %cst_19 = arith.constant dense<0.000000e+00> : vector<8x128xf32>
    %56 = tpu.matmul %55, %13, %cst_19 {dimension_numbers = #tpu.dot_dimension_numbers<[1], [0], [0], [1], [0, 0, 1, 1], [], []>} : vector<8x32xbf16>, vector<32x128xbf16>, vector<8x128xf32> -> vector<8x128xf32>
    %57 = arith.addf %54, %56 : vector<8x128xf32>
    %58 = arith.negf %57 : vector<8x128xf32>
    %59 = math.exp %58 : vector<8x128xf32>
    %cst_20 = arith.constant 1.000000e+00 : f32
    %60 = vector.broadcast %cst_20 : f32 to vector<8x128xf32>
    %61 = arith.addf %60, %59 : vector<8x128xf32>
    %62 = arith.divf %60, %61 : vector<8x128xf32>
    %63 = math.tanh %57 : vector<8x128xf32>
    %64 = vector.extract_strided_slice %62 {offsets = [0, 0], sizes = [8, 32], strides = [1, 1]} : vector<8x128xf32> to vector<8x32xf32>
    %65 = vector.extract_strided_slice %62 {offsets = [0, 32], sizes = [8, 32], strides = [1, 1]} : vector<8x128xf32> to vector<8x32xf32>
    %66 = vector.extract_strided_slice %63 {offsets = [0, 64], sizes = [8, 32], strides = [1, 1]} : vector<8x128xf32> to vector<8x32xf32>
    %67 = vector.extract_strided_slice %62 {offsets = [0, 96], sizes = [8, 32], strides = [1, 1]} : vector<8x128xf32> to vector<8x32xf32>
    %68 = arith.mulf %65, %51 : vector<8x32xf32>
    %69 = arith.mulf %64, %66 : vector<8x32xf32>
    %70 = arith.addf %68, %69 : vector<8x32xf32>
    %71 = math.tanh %70 : vector<8x32xf32>
    %72 = arith.mulf %67, %71 : vector<8x32xf32>
    %c24 = arith.constant 24 : index
    %c0_21 = arith.constant 0 : index
    %73 = vector.load %arg7[%c24, %c0_21] : memref<64x128xf32, #tpu.memory_space<vmem>>, vector<8x128xf32>
    %74 = arith.truncf %72 : vector<8x32xf32> to vector<8x32xbf16>
    %cst_22 = arith.constant dense<0.000000e+00> : vector<8x128xf32>
    %75 = tpu.matmul %74, %13, %cst_22 {dimension_numbers = #tpu.dot_dimension_numbers<[1], [0], [0], [1], [0, 0, 1, 1], [], []>} : vector<8x32xbf16>, vector<32x128xbf16>, vector<8x128xf32> -> vector<8x128xf32>
    %76 = arith.addf %73, %75 : vector<8x128xf32>
    %77 = arith.negf %76 : vector<8x128xf32>
    %78 = math.exp %77 : vector<8x128xf32>
    %cst_23 = arith.constant 1.000000e+00 : f32
    %79 = vector.broadcast %cst_23 : f32 to vector<8x128xf32>
    %80 = arith.addf %79, %78 : vector<8x128xf32>
    %81 = arith.divf %79, %80 : vector<8x128xf32>
    %82 = math.tanh %76 : vector<8x128xf32>
    %83 = vector.extract_strided_slice %81 {offsets = [0, 0], sizes = [8, 32], strides = [1, 1]} : vector<8x128xf32> to vector<8x32xf32>
    %84 = vector.extract_strided_slice %81 {offsets = [0, 32], sizes = [8, 32], strides = [1, 1]} : vector<8x128xf32> to vector<8x32xf32>
    %85 = vector.extract_strided_slice %82 {offsets = [0, 64], sizes = [8, 32], strides = [1, 1]} : vector<8x128xf32> to vector<8x32xf32>
    %86 = vector.extract_strided_slice %81 {offsets = [0, 96], sizes = [8, 32], strides = [1, 1]} : vector<8x128xf32> to vector<8x32xf32>
    %87 = arith.mulf %84, %70 : vector<8x32xf32>
    %88 = arith.mulf %83, %85 : vector<8x32xf32>
    %89 = arith.addf %87, %88 : vector<8x32xf32>
    %90 = math.tanh %89 : vector<8x32xf32>
    %91 = arith.mulf %86, %90 : vector<8x32xf32>
    %c32 = arith.constant 32 : index
    %c0_24 = arith.constant 0 : index
    %92 = vector.load %arg7[%c32, %c0_24] : memref<64x128xf32, #tpu.memory_space<vmem>>, vector<8x128xf32>
    %93 = arith.truncf %91 : vector<8x32xf32> to vector<8x32xbf16>
    %cst_25 = arith.constant dense<0.000000e+00> : vector<8x128xf32>
    %94 = tpu.matmul %93, %13, %cst_25 {dimension_numbers = #tpu.dot_dimension_numbers<[1], [0], [0], [1], [0, 0, 1, 1], [], []>} : vector<8x32xbf16>, vector<32x128xbf16>, vector<8x128xf32> -> vector<8x128xf32>
    %95 = arith.addf %92, %94 : vector<8x128xf32>
    %96 = arith.negf %95 : vector<8x128xf32>
    %97 = math.exp %96 : vector<8x128xf32>
    %cst_26 = arith.constant 1.000000e+00 : f32
    %98 = vector.broadcast %cst_26 : f32 to vector<8x128xf32>
    %99 = arith.addf %98, %97 : vector<8x128xf32>
    %100 = arith.divf %98, %99 : vector<8x128xf32>
    %101 = math.tanh %95 : vector<8x128xf32>
    %102 = vector.extract_strided_slice %100 {offsets = [0, 0], sizes = [8, 32], strides = [1, 1]} : vector<8x128xf32> to vector<8x32xf32>
    %103 = vector.extract_strided_slice %100 {offsets = [0, 32], sizes = [8, 32], strides = [1, 1]} : vector<8x128xf32> to vector<8x32xf32>
    %104 = vector.extract_strided_slice %101 {offsets = [0, 64], sizes = [8, 32], strides = [1, 1]} : vector<8x128xf32> to vector<8x32xf32>
    %105 = vector.extract_strided_slice %100 {offsets = [0, 96], sizes = [8, 32], strides = [1, 1]} : vector<8x128xf32> to vector<8x32xf32>
    %106 = arith.mulf %103, %89 : vector<8x32xf32>
    %107 = arith.mulf %102, %104 : vector<8x32xf32>
    %108 = arith.addf %106, %107 : vector<8x32xf32>
    %109 = math.tanh %108 : vector<8x32xf32>
    %110 = arith.mulf %105, %109 : vector<8x32xf32>
    %c40 = arith.constant 40 : index
    %c0_27 = arith.constant 0 : index
    %111 = vector.load %arg7[%c40, %c0_27] : memref<64x128xf32, #tpu.memory_space<vmem>>, vector<8x128xf32>
    %112 = arith.truncf %110 : vector<8x32xf32> to vector<8x32xbf16>
    %cst_28 = arith.constant dense<0.000000e+00> : vector<8x128xf32>
    %113 = tpu.matmul %112, %13, %cst_28 {dimension_numbers = #tpu.dot_dimension_numbers<[1], [0], [0], [1], [0, 0, 1, 1], [], []>} : vector<8x32xbf16>, vector<32x128xbf16>, vector<8x128xf32> -> vector<8x128xf32>
    %114 = arith.addf %111, %113 : vector<8x128xf32>
    %115 = arith.negf %114 : vector<8x128xf32>
    %116 = math.exp %115 : vector<8x128xf32>
    %cst_29 = arith.constant 1.000000e+00 : f32
    %117 = vector.broadcast %cst_29 : f32 to vector<8x128xf32>
    %118 = arith.addf %117, %116 : vector<8x128xf32>
    %119 = arith.divf %117, %118 : vector<8x128xf32>
    %120 = math.tanh %114 : vector<8x128xf32>
    %121 = vector.extract_strided_slice %119 {offsets = [0, 0], sizes = [8, 32], strides = [1, 1]} : vector<8x128xf32> to vector<8x32xf32>
    %122 = vector.extract_strided_slice %119 {offsets = [0, 32], sizes = [8, 32], strides = [1, 1]} : vector<8x128xf32> to vector<8x32xf32>
    %123 = vector.extract_strided_slice %120 {offsets = [0, 64], sizes = [8, 32], strides = [1, 1]} : vector<8x128xf32> to vector<8x32xf32>
    %124 = vector.extract_strided_slice %119 {offsets = [0, 96], sizes = [8, 32], strides = [1, 1]} : vector<8x128xf32> to vector<8x32xf32>
    %125 = arith.mulf %122, %108 : vector<8x32xf32>
    %126 = arith.mulf %121, %123 : vector<8x32xf32>
    %127 = arith.addf %125, %126 : vector<8x32xf32>
    %128 = math.tanh %127 : vector<8x32xf32>
    %129 = arith.mulf %124, %128 : vector<8x32xf32>
    %c48 = arith.constant 48 : index
    %c0_30 = arith.constant 0 : index
    %130 = vector.load %arg7[%c48, %c0_30] : memref<64x128xf32, #tpu.memory_space<vmem>>, vector<8x128xf32>
    %131 = arith.truncf %129 : vector<8x32xf32> to vector<8x32xbf16>
    %cst_31 = arith.constant dense<0.000000e+00> : vector<8x128xf32>
    %132 = tpu.matmul %131, %13, %cst_31 {dimension_numbers = #tpu.dot_dimension_numbers<[1], [0], [0], [1], [0, 0, 1, 1], [], []>} : vector<8x32xbf16>, vector<32x128xbf16>, vector<8x128xf32> -> vector<8x128xf32>
    %133 = arith.addf %130, %132 : vector<8x128xf32>
    %134 = arith.negf %133 : vector<8x128xf32>
    %135 = math.exp %134 : vector<8x128xf32>
    %cst_32 = arith.constant 1.000000e+00 : f32
    %136 = vector.broadcast %cst_32 : f32 to vector<8x128xf32>
    %137 = arith.addf %136, %135 : vector<8x128xf32>
    %138 = arith.divf %136, %137 : vector<8x128xf32>
    %139 = math.tanh %133 : vector<8x128xf32>
    %140 = vector.extract_strided_slice %138 {offsets = [0, 0], sizes = [8, 32], strides = [1, 1]} : vector<8x128xf32> to vector<8x32xf32>
    %141 = vector.extract_strided_slice %138 {offsets = [0, 32], sizes = [8, 32], strides = [1, 1]} : vector<8x128xf32> to vector<8x32xf32>
    %142 = vector.extract_strided_slice %139 {offsets = [0, 64], sizes = [8, 32], strides = [1, 1]} : vector<8x128xf32> to vector<8x32xf32>
    %143 = vector.extract_strided_slice %138 {offsets = [0, 96], sizes = [8, 32], strides = [1, 1]} : vector<8x128xf32> to vector<8x32xf32>
    %144 = arith.mulf %141, %127 : vector<8x32xf32>
    %145 = arith.mulf %140, %142 : vector<8x32xf32>
    %146 = arith.addf %144, %145 : vector<8x32xf32>
    %147 = math.tanh %146 : vector<8x32xf32>
    %148 = arith.mulf %143, %147 : vector<8x32xf32>
    %c56 = arith.constant 56 : index
    %c0_33 = arith.constant 0 : index
    %149 = vector.load %arg7[%c56, %c0_33] : memref<64x128xf32, #tpu.memory_space<vmem>>, vector<8x128xf32>
    %150 = arith.truncf %148 : vector<8x32xf32> to vector<8x32xbf16>
    %cst_34 = arith.constant dense<0.000000e+00> : vector<8x128xf32>
    %151 = tpu.matmul %150, %13, %cst_34 {dimension_numbers = #tpu.dot_dimension_numbers<[1], [0], [0], [1], [0, 0, 1, 1], [], []>} : vector<8x32xbf16>, vector<32x128xbf16>, vector<8x128xf32> -> vector<8x128xf32>
    %152 = arith.addf %149, %151 : vector<8x128xf32>
    %153 = arith.negf %152 : vector<8x128xf32>
    %154 = math.exp %153 : vector<8x128xf32>
    %cst_35 = arith.constant 1.000000e+00 : f32
    %155 = vector.broadcast %cst_35 : f32 to vector<8x128xf32>
    %156 = arith.addf %155, %154 : vector<8x128xf32>
    %157 = arith.divf %155, %156 : vector<8x128xf32>
    %158 = math.tanh %152 : vector<8x128xf32>
    %159 = vector.extract_strided_slice %157 {offsets = [0, 0], sizes = [8, 32], strides = [1, 1]} : vector<8x128xf32> to vector<8x32xf32>
    %160 = vector.extract_strided_slice %157 {offsets = [0, 32], sizes = [8, 32], strides = [1, 1]} : vector<8x128xf32> to vector<8x32xf32>
    %161 = vector.extract_strided_slice %158 {offsets = [0, 64], sizes = [8, 32], strides = [1, 1]} : vector<8x128xf32> to vector<8x32xf32>
    %162 = vector.extract_strided_slice %157 {offsets = [0, 96], sizes = [8, 32], strides = [1, 1]} : vector<8x128xf32> to vector<8x32xf32>
    %163 = arith.mulf %160, %146 : vector<8x32xf32>
    %164 = arith.mulf %159, %161 : vector<8x32xf32>
    %165 = arith.addf %163, %164 : vector<8x32xf32>
    %166 = math.tanh %165 : vector<8x32xf32>
    %167 = arith.mulf %162, %166 : vector<8x32xf32>
    %168 = arith.truncf %167 : vector<8x32xf32> to vector<8x32xbf16>
    %c0_36 = arith.constant 0 : index
    %c0_37 = arith.constant 0 : index
    %169 = vector.load %arg4[%c0_36, %c0_37] : memref<32x128xbf16, #tpu.memory_space<vmem>>, vector<32x128xbf16>
    %cst_38 = arith.constant dense<0.000000e+00> : vector<8x128xf32>
    %170 = tpu.matmul %168, %169, %cst_38 {dimension_numbers = #tpu.dot_dimension_numbers<[1], [0], [0], [1], [0, 0, 1, 1], [], []>} : vector<8x32xbf16>, vector<32x128xbf16>, vector<8x128xf32> -> vector<8x128xf32>
    %c0_39 = arith.constant 0 : index
    %c0_40 = arith.constant 0 : index
    %171 = vector.load %arg5[%c0_39, %c0_40] : memref<1x128xf32, #tpu.memory_space<vmem>>, vector<1x128xf32>
    %172 = vector.broadcast %171 : vector<1x128xf32> to vector<8x128xf32>
    %173 = arith.addf %170, %172 : vector<8x128xf32>
    %c0_41 = arith.constant 0 : index
    %c0_42 = arith.constant 0 : index
    %174 = vector.load %arg6[%c0_41, %c0_42] : memref<8x128xf32, #tpu.memory_space<vmem>>, vector<8x128xf32>
    tpu.vector_store %arg6[%c0_41, %c0_42], %173 {strides = array<i32>} : memref<8x128xf32, #tpu.memory_space<vmem>>, vector<8x128xf32>,
    return
  }
}

</mosaic_0001>

<llo_original>
// kernel: tpu_custom_call.1
$region0: #{tpu_custom_call.1}
  #allocation0 [shape = 'u32[]', space=smem, size = 0x4, offset = 0x4, fixed_abs, tag = 'smem constant byte address 0x4 - core index']
  #allocation1 [shape = 'u32[144,128]{1,0:T(1,128)}', space=vmem, size = 0x12000, scoped, tag = 'internal scratch']
  #allocation2 [shape = 'f32[64,128]{1,0:T(8,128)}', space=vmem, size = 0x8000, scoped, tag = 'scratch operand']
  %s0 = inlined_call_operand.vmem [shape: s32[64,1], index: 0, kind: input, shape index: {}]
  %s1 = inlined_call_operand.vmem [shape: bf16[25,128], index: 1, kind: input, shape index: {}]
  %s2 = inlined_call_operand.vmem [shape: f32[1,128], index: 2, kind: input, shape index: {}]
  %s3 = inlined_call_operand.vmem [shape: bf16[32,128], index: 3, kind: input, shape index: {}]
  %s4 = inlined_call_operand.vmem [shape: bf16[32,128], index: 4, kind: input, shape index: {}]
  %s5 = inlined_call_operand.vmem [shape: f32[1,128], index: 5, kind: input, shape index: {}]
  %s6 = inlined_call_operand.hbm [shape: f32[8,128], index: 6, kind: output, shape index: {}]
  %s7 = sld [smem:[#allocation0]]
  $region34: #{tpu_custom_call.1} parent=0
    _
  %s9 = ssub.s32 1, %s7
  %s10 = scalar_select 0, %s9, %s7
  $region1: #{tpu_custom_call.1} parent=0
    #allocation3 [shape = 'u8[4096]{0}', space=vmem, size = 0x1000, scoped, tag = 'output window, operand 0, single buffered']
    #allocation4 [shape = 's32[1]{0}', space=sflag, size = 0x4, scoped, tag = 'scoped memory for tpu_custom_call.1']
    %11 = vsyncpa [#allocation4], 0
    // Predicated region
    $region2: #{tpu_custom_call.1} parent=1 // pred_check
      _
    $region3: #{tpu_custom_call.1} parent=1 // pred_check_branch
      %13 = sbr.rel (0) target = $region5
    $region4: #{tpu_custom_call.1} parent=1 // pred_region
      _
    $region5: #{tpu_custom_call.1} parent=1 // pred_fallthru
      _
    // Predicated region
    $region6: #{tpu_custom_call.1} parent=1 // pred_check
      _
    $region7: #{tpu_custom_call.1} parent=1 // pred_check_branch
      %15 = sbr.rel (0) target = $region9
    $region8: #{tpu_custom_call.1} parent=1 // pred_region
      _
    $region9: #{tpu_custom_call.1} parent=1 // pred_fallthru
      _
    // Predicated region
    $region10: #{tpu_custom_call.1} parent=1 // pred_check
      _
    $region11: #{tpu_custom_call.1} parent=1 // pred_check_branch
      %17 = sbr.rel (0) target = $region13
    $region12: #{tpu_custom_call.1} parent=1 // pred_region
      _
    $region13: #{tpu_custom_call.1} parent=1 // pred_fallthru
      _
    // Predicated region
    $region14: #{tpu_custom_call.1} parent=1 // pred_check
      _
    $region15: #{tpu_custom_call.1} parent=1 // pred_check_branch
      %19 = sbr.rel (0) target = $region17
    $region16: #{tpu_custom_call.1} parent=1 // pred_region
      _
    $region17: #{tpu_custom_call.1} parent=1 // pred_fallthru
      _
    // Predicated region
    $region18: #{tpu_custom_call.1} parent=1 // pred_check
      _
    $region19: #{tpu_custom_call.1} parent=1 // pred_check_branch
      %21 = sbr.rel (0) target = $region21
    $region20: #{tpu_custom_call.1} parent=1 // pred_region
      _
    $region21: #{tpu_custom_call.1} parent=1 // pred_fallthru
      _
    // Predicated region
    $region22: #{tpu_custom_call.1} parent=1 // pred_check
      _
    $region23: #{tpu_custom_call.1} parent=1 // pred_check_branch
      %23 = sbr.rel (0) target = $region25
    $region24: #{tpu_custom_call.1} parent=1 // pred_region
      _
    $region25: #{tpu_custom_call.1} parent=1 // pred_fallthru
      _
    %v25 = vld [vmem:[%s0] sm:$0xff]
    %v26 = vld [vmem:[%s0 + $0x8] sm:$0xff]
    %v27 = vld [vmem:[%s0 + $0x10] sm:$0xff]
    %v28 = vld [vmem:[%s0 + $0x18] sm:$0xff]
    %v29 = vld [vmem:[%s0 + $0x20] sm:$0xff]
    %v30 = vld [vmem:[%s0 + $0x28] sm:$0xff]
    %v31 = vld [vmem:[%s0 + $0x30] sm:$0xff]
    %v32 = vld [vmem:[%s0 + $0x38] sm:$0xff]
    %v33 = vlaneseq
    %v34 = vand.u32 %v33, 127
    %35 = vset.pattern.permute.xlu0 0
    %36 = vperm.xlu0 %35, %v25
    %v37 = vpop.permute.xlu0 %36
    %38 = vset.pattern.permute.xlu0 0
    %39 = vperm.xlu0 %38, %v26
    %v40 = vpop.permute.xlu0 %39
    %41 = vset.pattern.permute.xlu0 0
    %42 = vperm.xlu0 %41, %v27
    %v43 = vpop.permute.xlu0 %42
    %44 = vset.pattern.permute.xlu0 0
    %45 = vperm.xlu0 %44, %v28
    %v46 = vpop.permute.xlu0 %45
    %47 = vset.pattern.permute.xlu0 0
    %48 = vperm.xlu0 %47, %v29
    %v49 = vpop.permute.xlu0 %48
    %50 = vset.pattern.permute.xlu0 0
    %51 = vperm.xlu0 %50, %v30
    %v52 = vpop.permute.xlu0 %51
    %53 = vset.pattern.permute.xlu0 0
    %54 = vperm.xlu0 %53, %v31
    %v55 = vpop.permute.xlu0 %54
    %56 = vset.pattern.permute.xlu0 0
    %57 = vperm.xlu0 %56, %v32
    %v58 = vpop.permute.xlu0 %57
    %vm59 = vcmp.eq.s32.totalorder %v37, %v34
    %vm60 = vcmp.eq.s32.totalorder %v40, %v34
    %vm61 = vcmp.eq.s32.totalorder %v43, %v34
    %vm62 = vcmp.eq.s32.totalorder %v46, %v34
    %vm63 = vcmp.eq.s32.totalorder %v49, %v34
    %vm64 = vcmp.eq.s32.totalorder %v52, %v34
    %vm65 = vcmp.eq.s32.totalorder %v55, %v34
    %vm66 = vcmp.eq.s32.totalorder %v58, %v34
    %v67 = vsel %vm59, 1, 0
    %v68 = vsel %vm60, 1, 0
    %v69 = vsel %vm61, 1, 0
    %v70 = vsel %vm62, 1, 0
    %v71 = vsel %vm63, 1, 0
    %v72 = vsel %vm64, 1, 0
    %v73 = vsel %vm65, 1, 0
    %v74 = vsel %vm66, 1, 0
    %v75 = vcvt.s32.f32 %v67
    %v76 = vcvt.s32.f32 %v68
    %v77 = vcvt.s32.f32 %v69
    %v78 = vcvt.s32.f32 %v70
    %v79 = vcvt.s32.f32 %v71
    %v80 = vcvt.s32.f32 %v72
    %v81 = vcvt.s32.f32 %v73
    %v82 = vcvt.s32.f32 %v74
    %v83 = vpack.c.bf16 %v76, %v75
    %v84 = vpack.c.bf16 %v78, %v77
    %v85 = vpack.c.bf16 %v80, %v79
    %v86 = vpack.c.bf16 %v82, %v81
    %v87 = vld [vmem:[%s1] sm:$0xf]
    %v88 = vld [vmem:[%s1 + $0x4] sm:$0xf]
    %v89 = vld [vmem:[%s1 + $0x8] sm:$0xf]
    %v90 = vld [vmem:[%s1 + $0xc] sm:$0x1]
    %v91 = vld [vmem:[%s2] sm:$0x1]
    %v93 = vlaneseq
    %v94 = vshrl.u32 %v93, 7
    %v95 = vsub.s32 0, %v94
    %v96 = vrot.slane %v91, %v95
    %v102 = vunpack.c.l.b16 %v87
    %v103 = vunpack.c.l.b16 %v88
    %v104 = vunpack.c.l.b16 %v89
    %v105 = vunpack.c.l.b16 %v90
    %v106 = vpack.c.b16 %v103, %v102
    %v107 = vpack.c.b16 %v105, %v104
    %vm109 = vcmask 203776
    %v111 = vsel %vm109, %v83, 0
    %v114 = vsel %vm109, %v84, 0
    %v117 = vsel %vm109, %v85, 0
    %v120 = vsel %vm109, %v86, 0
    %vm122 = vcmask 1043456
    %vm123 = vcmask 1044480
    %v124 = vsel %vm122, 4294967295, 65535
    %v125 = vsel %vm123, %v124, 0
    %v127 = vand.u32 %v107, %v125
    %129 = vmatprep.subr.bf16.mxu0 0
    %130 = vmatpush1.bf16.msra.mxu0 %v106
    %131 = vmatprep.subr.bf16.mxu0 0
    %132 = vmatpush1.bf16.msra.mxu0 %v127
    %133 = vmatprep.subr.bf16.mxu0 0
    %134 = vmatpush1.bf16.msra.mxu0 0
    %135 = vmatprep.subr.bf16.mxu0 0
    %136 = vmatpush1.bf16.msra.mxu0 0
    %137 = vmatprep.subr.bf16.mxu0 0
    %138 = vmatpush1.bf16.msra.mxu0 0
    %139 = vmatprep.subr.bf16.mxu0 0
    %140 = vmatpush1.bf16.msra.mxu0 0
    %141 = vmatprep.subr.bf16.mxu0 0
    %142 = vmatpush1.bf16.msra.mxu0 0
    %143 = vmatprep.subr.bf16.mxu0 0
    %144 = vmatpush1.bf16.msra.mxu0 0
    %145 = vmatprep.subr.bf16.mxu0 0
    %146 = vmatpush1.bf16.msra.mxu0 0
    %147 = vmatprep.subr.bf16.mxu0 0
    %148 = vmatpush1.bf16.msra.mxu0 0
    %149 = vmatprep.subr.bf16.mxu0 0
    %150 = vmatpush1.bf16.msra.mxu0 0
    %151 = vmatprep.subr.bf16.mxu0 0
    %152 = vmatpush1.bf16.msra.mxu0 0
    %153 = vmatprep.subr.bf16.mxu0 0
    %154 = vmatpush1.bf16.msra.mxu0 0
    %155 = vmatprep.subr.bf16.mxu0 0
    %156 = vmatpush1.bf16.msra.mxu0 0
    %157 = vmatprep.subr.bf16.mxu0 0
    %158 = vmatpush1.bf16.msra.mxu0 0
    %159 = vmatprep.subr.bf16.mxu0 0
    %160 = vmatpush1.bf16.msra.mxu0 0
    %161 = vmatprep.mubr.bf16.mxu0 0
    %162 = vmatmul.mubr.bf16.gmra.mrb[0].mxu0 %v111
    %v163 = vpop.f32.mrb[0].mxu0
    %v164 = vadd.f32 %v96, %v163
    %v165 = vpop.f32.mrb[0].mxu0
    %v166 = vpop.f32.mrb[0].mxu0
    %v167 = vadd.f32 %v96, %v166
    %v168 = vpop.f32.mrb[0].mxu0
    %169 = vmatprep.mubr.bf16.mxu0 0
    %170 = vmatmul.mubr.bf16.gmra.mrb[0].mxu0 %v114
    %v171 = vpop.f32.mrb[0].mxu0
    %v172 = vadd.f32 %v96, %v171
    %v173 = vpop.f32.mrb[0].mxu0
    %v174 = vpop.f32.mrb[0].mxu0
    %v175 = vadd.f32 %v96, %v174
    %v176 = vpop.f32.mrb[0].mxu0
    %177 = vmatprep.mubr.bf16.mxu0 0
    %178 = vmatmul.mubr.bf16.gmra.mrb[0].mxu0 %v117
    %v179 = vpop.f32.mrb[0].mxu0
    %v180 = vadd.f32 %v96, %v179
    %v181 = vpop.f32.mrb[0].mxu0
    %v182 = vpop.f32.mrb[0].mxu0
    %v183 = vadd.f32 %v96, %v182
    %v184 = vpop.f32.mrb[0].mxu0
    %185 = vmatprep.mubr.bf16.mxu0 0
    %186 = vmatmul.mubr.bf16.gmra.mrb[0].mxu0 %v120
    %v187 = vpop.f32.mrb[0].mxu0
    %v188 = vadd.f32 %v96, %v187
    %v189 = vpop.f32.mrb[0].mxu0
    %v190 = vpop.f32.mrb[0].mxu0
    %v191 = vadd.f32 %v96, %v190
    %v192 = vpop.f32.mrb[0].mxu0
    %193 = vdwg.mxu0
    %194 = vst [vmem:[#allocation2] sm:$0xff] %v164
    %195 = vst [vmem:[#allocation2 + $0x8] sm:$0xff] %v167
    %196 = vst [vmem:[#allocation2 + $0x10] sm:$0xff] %v172
    %197 = vst [vmem:[#allocation2 + $0x18] sm:$0xff] %v175
    %198 = vst [vmem:[#allocation2 + $0x20] sm:$0xff] %v180
    %199 = vst [vmem:[#allocation2 + $0x28] sm:$0xff] %v183
    %200 = vst [vmem:[#allocation2 + $0x30] sm:$0xff] %v188
    %201 = vst [vmem:[#allocation2 + $0x38] sm:$0xff] %v191
    %v202 = vld [vmem:[%s3] sm:$0xf]
    %v203 = vld [vmem:[%s3 + $0x4] sm:$0xf]
    %v204 = vld [vmem:[%s3 + $0x8] sm:$0xf]
    %v205 = vld [vmem:[%s3 + $0xc] sm:$0xf]
    %v206 = vld [vmem:[#allocation2] sm:$0xff]
    %v211 = vunpack.c.l.b16 %v202
    %v212 = vunpack.c.l.b16 %v203
    %v213 = vunpack.c.l.b16 %v204
    %v214 = vunpack.c.l.b16 %v205
    %v215 = vpack.c.b16 %v212, %v211
    %v216 = vpack.c.b16 %v214, %v213
    %vm219 = vcmask 261120
    %v221 = vsel %vm219, 0, 0
    %223 = vmatprep.subr.bf16.mxu0 0
    %224 = vmatpush1.bf16.msra.mxu0 %v215
    %225 = vmatprep.subr.bf16.mxu0 0
    %226 = vmatpush1.bf16.msra.mxu0 %v216
    %227 = vmatprep.subr.bf16.mxu0 0
    %228 = vmatpush1.bf16.msra.mxu0 0
    %229 = vmatprep.subr.bf16.mxu0 0
    %230 = vmatpush1.bf16.msra.mxu0 0
    %231 = vmatprep.subr.bf16.mxu0 0
    %232 = vmatpush1.bf16.msra.mxu0 0
    %233 = vmatprep.subr.bf16.mxu0 0
    %234 = vmatpush1.bf16.msra.mxu0 0
    %235 = vmatprep.subr.bf16.mxu0 0
    %236 = vmatpush1.bf16.msra.mxu0 0
    %237 = vmatprep.subr.bf16.mxu0 0
    %238 = vmatpush1.bf16.msra.mxu0 0
    %239 = vmatprep.subr.bf16.mxu0 0
    %240 = vmatpush1.bf16.msra.mxu0 0
    %241 = vmatprep.subr.bf16.mxu0 0
    %242 = vmatpush1.bf16.msra.mxu0 0
    %243 = vmatprep.subr.bf16.mxu0 0
    %244 = vmatpush1.bf16.msra.mxu0 0
    %245 = vmatprep.subr.bf16.mxu0 0
    %246 = vmatpush1.bf16.msra.mxu0 0
    %247 = vmatprep.subr.bf16.mxu0 0
    %248 = vmatpush1.bf16.msra.mxu0 0
    %249 = vmatprep.subr.bf16.mxu0 0
    %250 = vmatpush1.bf16.msra.mxu0 0
    %251 = vmatprep.subr.bf16.mxu0 0
    %252 = vmatpush1.bf16.msra.mxu0 0
    %253 = vmatprep.subr.bf16.mxu0 0
    %254 = vmatpush1.bf16.msra.mxu0 0
    %255 = vmatprep.mubr.bf16.mxu0 0
    %256 = vmatmul.mubr.bf16.gmra.mrb[0].mxu0 %v221
    %v257 = vpop.f32.mrb[0].mxu0
    %v258 = vadd.f32 0.0, %v257
    %v259 = vpop.f32.mrb[0].mxu0
    %v260 = vpop.f32.mrb[0].mxu0
    %v261 = vpop.f32.mrb[0].mxu0
    %262 = vdwg.mxu0
    %v263 = vadd.f32 %v206, %v258
    %v264 = vxor.u32 %v263, 2147483648
    %v265 = vmul.f32 %v264, 1.442695
    %v266 = vpow.pop %v265
    %v267 = vadd.f32 %v266, 1.0
    %v268 = vrcp.pop %v267
    %v269 = vmul.f32 1.0, %v268
    %v270 = vtanh.pop %v263
    %v271 = vmul.f32 %v269, 0.0
    %273 = vrot.lane.b32.xlu0 %v270, 64
    %v274 = vpop.permute.xlu0 %273
    %v276 = vmul.f32 %v269, %v274
    %278 = vrot.lane.b32.xlu0 %v276, 32
    %v279 = vpop.permute.xlu0 %278
    %v281 = vadd.f32 %v271, %v279
    %v282 = vtanh.pop %v281
    %284 = vrot.lane.b32.xlu0 %v282, 64
    %v285 = vpop.permute.xlu0 %284
    %v287 = vmul.f32 %v269, %v285
    %v288 = vld [vmem:[#allocation2 + $0x8] sm:$0xff]
    %v289 = vpack.c.bf16 %v287, %v287
    %291 = vrot.lane.b32.xlu0 %v289, 32
    %v292 = vpop.permute.xlu0 %291
    %v294 = vsel %vm219, %v292, 0
    %296 = vmatprep.subr.bf16.mxu0 0
    %297 = vmatpush1.bf16.msra.mxu0 %v215
    %298 = vmatprep.subr.bf16.mxu0 0
    %299 = vmatpush1.bf16.msra.mxu0 %v216
    %300 = vmatprep.subr.bf16.mxu0 0
    %301 = vmatpush1.bf16.msra.mxu0 0
    %302 = vmatprep.subr.bf16.mxu0 0
    %303 = vmatpush1.bf16.msra.mxu0 0
    %304 = vmatprep.subr.bf16.mxu0 0
    %305 = vmatpush1.bf16.msra.mxu0 0
    %306 = vmatprep.subr.bf16.mxu0 0
    %307 = vmatpush1.bf16.msra.mxu0 0
    %308 = vmatprep.subr.bf16.mxu0 0
    %309 = vmatpush1.bf16.msra.mxu0 0
    %310 = vmatprep.subr.bf16.mxu0 0
    %311 = vmatpush1.bf16.msra.mxu0 0
    %312 = vmatprep.subr.bf16.mxu0 0
    %313 = vmatpush1.bf16.msra.mxu0 0
    %314 = vmatprep.subr.bf16.mxu0 0
    %315 = vmatpush1.bf16.msra.mxu0 0
    %316 = vmatprep.subr.bf16.mxu0 0
    %317 = vmatpush1.bf16.msra.mxu0 0
    %318 = vmatprep.subr.bf16.mxu0 0
    %319 = vmatpush1.bf16.msra.mxu0 0
    %320 = vmatprep.subr.bf16.mxu0 0
    %321 = vmatpush1.bf16.msra.mxu0 0
    %322 = vmatprep.subr.bf16.mxu0 0
    %323 = vmatpush1.bf16.msra.mxu0 0
    %324 = vmatprep.subr.bf16.mxu0 0
    %325 = vmatpush1.bf16.msra.mxu0 0
    %326 = vmatprep.subr.bf16.mxu0 0
    %327 = vmatpush1.bf16.msra.mxu0 0
    %328 = vmatprep.mubr.bf16.mxu0 0
    %329 = vmatmul.mubr.bf16.gmra.mrb[0].mxu0 %v294
    %v330 = vpop.f32.mrb[0].mxu0
    %v331 = vadd.f32 0.0, %v330
    %v332 = vpop.f32.mrb[0].mxu0
    %v333 = vpop.f32.mrb[0].mxu0
    %v334 = vpop.f32.mrb[0].mxu0
    %335 = vdwg.mxu0
    %v336 = vadd.f32 %v288, %v331
    %v337 = vxor.u32 %v336, 2147483648
    %v338 = vmul.f32 %v337, 1.442695
    %v339 = vpow.pop %v338
    %v340 = vadd.f32 %v339, 1.0
    %v341 = vrcp.pop %v340
    %v342 = vmul.f32 1.0, %v341
    %v343 = vtanh.pop %v336
    %v344 = vmul.f32 %v342, %v281
    %346 = vrot.lane.b32.xlu0 %v343, 64
    %v347 = vpop.permute.xlu0 %346
    %v349 = vmul.f32 %v342, %v347
    %351 = vrot.lane.b32.xlu0 %v349, 32
    %v352 = vpop.permute.xlu0 %351
    %v354 = vadd.f32 %v344, %v352
    %v355 = vtanh.pop %v354
    %357 = vrot.lane.b32.xlu0 %v355, 64
    %v358 = vpop.permute.xlu0 %357
    %v360 = vmul.f32 %v342, %v358
    %v361 = vld [vmem:[#allocation2 + $0x10] sm:$0xff]
    %v362 = vpack.c.bf16 %v360, %v360
    %364 = vrot.lane.b32.xlu0 %v362, 32
    %v365 = vpop.permute.xlu0 %364
    %v367 = vsel %vm219, %v365, 0
    %369 = vmatprep.subr.bf16.mxu0 0
    %370 = vmatpush1.bf16.msra.mxu0 %v215
    %371 = vmatprep.subr.bf16.mxu0 0
    %372 = vmatpush1.bf16.msra.mxu0 %v216
    %373 = vmatprep.subr.bf16.mxu0 0
    %374 = vmatpush1.bf16.msra.mxu0 0
    %375 = vmatprep.subr.bf16.mxu0 0
    %376 = vmatpush1.bf16.msra.mxu0 0
    %377 = vmatprep.subr.bf16.mxu0 0
    %378 = vmatpush1.bf16.msra.mxu0 0
    %379 = vmatprep.subr.bf16.mxu0 0
    %380 = vmatpush1.bf16.msra.mxu0 0
    %381 = vmatprep.subr.bf16.mxu0 0
    %382 = vmatpush1.bf16.msra.mxu0 0
    %383 = vmatprep.subr.bf16.mxu0 0
    %384 = vmatpush1.bf16.msra.mxu0 0
    %385 = vmatprep.subr.bf16.mxu0 0
    %386 = vmatpush1.bf16.msra.mxu0 0
    %387 = vmatprep.subr.bf16.mxu0 0
    %388 = vmatpush1.bf16.msra.mxu0 0
    %389 = vmatprep.subr.bf16.mxu0 0
    %390 = vmatpush1.bf16.msra.mxu0 0
    %391 = vmatprep.subr.bf16.mxu0 0
    %392 = vmatpush1.bf16.msra.mxu0 0
    %393 = vmatprep.subr.bf16.mxu0 0
    %394 = vmatpush1.bf16.msra.mxu0 0
    %395 = vmatprep.subr.bf16.mxu0 0
    %396 = vmatpush1.bf16.msra.mxu0 0
    %397 = vmatprep.subr.bf16.mxu0 0
    %398 = vmatpush1.bf16.msra.mxu0 0
    %399 = vmatprep.subr.bf16.mxu0 0
    %400 = vmatpush1.bf16.msra.mxu0 0
    %401 = vmatprep.mubr.bf16.mxu0 0
    %402 = vmatmul.mubr.bf16.gmra.mrb[0].mxu0 %v367
    %v403 = vpop.f32.mrb[0].mxu0
    %v404 = vadd.f32 0.0, %v403
    %v405 = vpop.f32.mrb[0].mxu0
    %v406 = vpop.f32.mrb[0].mxu0
    %v407 = vpop.f32.mrb[0].mxu0
    %408 = vdwg.mxu0
    %v409 = vadd.f32 %v361, %v404
    %v410 = vxor.u32 %v409, 2147483648
    %v411 = vmul.f32 %v410, 1.442695
    %v412 = vpow.pop %v411
    %v413 = vadd.f32 %v412, 1.0
    %v414 = vrcp.pop %v413
    %v415 = vmul.f32 1.0, %v414
    %v416 = vtanh.pop %v409
    %v417 = vmul.f32 %v415, %v354
    %419 = vrot.lane.b32.xlu0 %v416, 64
    %v420 = vpop.permute.xlu0 %419
    %v422 = vmul.f32 %v415, %v420
    %424 = vrot.lane.b32.xlu0 %v422, 32
    %v425 = vpop.permute.xlu0 %424
    %v427 = vadd.f32 %v417, %v425
    %v428 = vtanh.pop %v427
    %430 = vrot.lane.b32.xlu0 %v428, 64
    %v431 = vpop.permute.xlu0 %430
    %v433 = vmul.f32 %v415, %v431
    %v434 = vld [vmem:[#allocation2 + $0x18] sm:$0xff]
    %v435 = vpack.c.bf16 %v433, %v433
    %437 = vrot.lane.b32.xlu0 %v435, 32
    %v438 = vpop.permute.xlu0 %437
    %v440 = vsel %vm219, %v438, 0
    %442 = vmatprep.subr.bf16.mxu0 0
    %443 = vmatpush1.bf16.msra.mxu0 %v215
    %444 = vmatprep.subr.bf16.mxu0 0
    %445 = vmatpush1.bf16.msra.mxu0 %v216
    %446 = vmatprep.subr.bf16.mxu0 0
    %447 = vmatpush1.bf16.msra.mxu0 0
    %448 = vmatprep.subr.bf16.mxu0 0
    %449 = vmatpush1.bf16.msra.mxu0 0
    %450 = vmatprep.subr.bf16.mxu0 0
    %451 = vmatpush1.bf16.msra.mxu0 0
    %452 = vmatprep.subr.bf16.mxu0 0
    %453 = vmatpush1.bf16.msra.mxu0 0
    %454 = vmatprep.subr.bf16.mxu0 0
    %455 = vmatpush1.bf16.msra.mxu0 0
    %456 = vmatprep.subr.bf16.mxu0 0
    %457 = vmatpush1.bf16.msra.mxu0 0
    %458 = vmatprep.subr.bf16.mxu0 0
    %459 = vmatpush1.bf16.msra.mxu0 0
    %460 = vmatprep.subr.bf16.mxu0 0
    %461 = vmatpush1.bf16.msra.mxu0 0
    %462 = vmatprep.subr.bf16.mxu0 0
    %463 = vmatpush1.bf16.msra.mxu0 0
    %464 = vmatprep.subr.bf16.mxu0 0
    %465 = vmatpush1.bf16.msra.mxu0 0
    %466 = vmatprep.subr.bf16.mxu0 0
    %467 = vmatpush1.bf16.msra.mxu0 0
    %468 = vmatprep.subr.bf16.mxu0 0
    %469 = vmatpush1.bf16.msra.mxu0 0
    %470 = vmatprep.subr.bf16.mxu0 0
    %471 = vmatpush1.bf16.msra.mxu0 0
    %472 = vmatprep.subr.bf16.mxu0 0
    %473 = vmatpush1.bf16.msra.mxu0 0
    %474 = vmatprep.mubr.bf16.mxu0 0
    %475 = vmatmul.mubr.bf16.gmra.mrb[0].mxu0 %v440
    %v476 = vpop.f32.mrb[0].mxu0
    %v477 = vadd.f32 0.0, %v476
    %v478 = vpop.f32.mrb[0].mxu0
    %v479 = vpop.f32.mrb[0].mxu0
    %v480 = vpop.f32.mrb[0].mxu0
    %481 = vdwg.mxu0
    %v482 = vadd.f32 %v434, %v477
    %v483 = vxor.u32 %v482, 2147483648
    %v484 = vmul.f32 %v483, 1.442695
    %v485 = vpow.pop %v484
    %v486 = vadd.f32 %v485, 1.0
    %v487 = vrcp.pop %v486
    %v488 = vmul.f32 1.0, %v487
    %v489 = vtanh.pop %v482
    %v490 = vmul.f32 %v488, %v427
    %492 = vrot.lane.b32.xlu0 %v489, 64
    %v493 = vpop.permute.xlu0 %492
    %v495 = vmul.f32 %v488, %v493
    %497 = vrot.lane.b32.xlu0 %v495, 32
    %v498 = vpop.permute.xlu0 %497
    %v500 = vadd.f32 %v490, %v498
    %v501 = vtanh.pop %v500
    %503 = vrot.lane.b32.xlu0 %v501, 64
    %v504 = vpop.permute.xlu0 %503
    %v506 = vmul.f32 %v488, %v504
    %v507 = vld [vmem:[#allocation2 + $0x20] sm:$0xff]
    %v508 = vpack.c.bf16 %v506, %v506
    %510 = vrot.lane.b32.xlu0 %v508, 32
    %v511 = vpop.permute.xlu0 %510
    %v513 = vsel %vm219, %v511, 0
    %515 = vmatprep.subr.bf16.mxu0 0
    %516 = vmatpush1.bf16.msra.mxu0 %v215
    %517 = vmatprep.subr.bf16.mxu0 0
    %518 = vmatpush1.bf16.msra.mxu0 %v216
    %519 = vmatprep.subr.bf16.mxu0 0
    %520 = vmatpush1.bf16.msra.mxu0 0
    %521 = vmatprep.subr.bf16.mxu0 0
    %522 = vmatpush1.bf16.msra.mxu0 0
    %523 = vmatprep.subr.bf16.mxu0 0
    %524 = vmatpush1.bf16.msra.mxu0 0
    %525 = vmatprep.subr.bf16.mxu0 0
    %526 = vmatpush1.bf16.msra.mxu0 0
    %527 = vmatprep.subr.bf16.mxu0 0
    %528 = vmatpush1.bf16.msra.mxu0 0
    %529 = vmatprep.subr.bf16.mxu0 0
    %530 = vmatpush1.bf16.msra.mxu0 0
    %531 = vmatprep.subr.bf16.mxu0 0
    %532 = vmatpush1.bf16.msra.mxu0 0
    %533 = vmatprep.subr.bf16.mxu0 0
    %534 = vmatpush1.bf16.msra.mxu0 0
    %535 = vmatprep.subr.bf16.mxu0 0
    %536 = vmatpush1.bf16.msra.mxu0 0
    %537 = vmatprep.subr.bf16.mxu0 0
    %538 = vmatpush1.bf16.msra.mxu0 0
    %539 = vmatprep.subr.bf16.mxu0 0
    %540 = vmatpush1.bf16.msra.mxu0 0
    %541 = vmatprep.subr.bf16.mxu0 0
    %542 = vmatpush1.bf16.msra.mxu0 0
    %543 = vmatprep.subr.bf16.mxu0 0
    %544 = vmatpush1.bf16.msra.mxu0 0
    %545 = vmatprep.subr.bf16.mxu0 0
    %546 = vmatpush1.bf16.msra.mxu0 0
    %547 = vmatprep.mubr.bf16.mxu0 0
    %548 = vmatmul.mubr.bf16.gmra.mrb[0].mxu0 %v513
    %v549 = vpop.f32.mrb[0].mxu0
    %v550 = vadd.f32 0.0, %v549
    %v551 = vpop.f32.mrb[0].mxu0
    %v552 = vpop.f32.mrb[0].mxu0
    %v553 = vpop.f32.mrb[0].mxu0
    %554 = vdwg.mxu0
    %v555 = vadd.f32 %v507, %v550
    %v556 = vxor.u32 %v555, 2147483648
    %v557 = vmul.f32 %v556, 1.442695
    %v558 = vpow.pop %v557
    %v559 = vadd.f32 %v558, 1.0
    %v560 = vrcp.pop %v559
    %v561 = vmul.f32 1.0, %v560
    %v562 = vtanh.pop %v555
    %v563 = vmul.f32 %v561, %v500
    %565 = vrot.lane.b32.xlu0 %v562, 64
    %v566 = vpop.permute.xlu0 %565
    %v568 = vmul.f32 %v561, %v566
    %570 = vrot.lane.b32.xlu0 %v568, 32
    %v571 = vpop.permute.xlu0 %570
    %v573 = vadd.f32 %v563, %v571
    %v574 = vtanh.pop %v573
    %576 = vrot.lane.b32.xlu0 %v574, 64
    %v577 = vpop.permute.xlu0 %576
    %v579 = vmul.f32 %v561, %v577
    %v580 = vld [vmem:[#allocation2 + $0x28] sm:$0xff]
    %v581 = vpack.c.bf16 %v579, %v579
    %583 = vrot.lane.b32.xlu0 %v581, 32
    %v584 = vpop.permute.xlu0 %583
    %v586 = vsel %vm219, %v584, 0
    %588 = vmatprep.subr.bf16.mxu0 0
    %589 = vmatpush1.bf16.msra.mxu0 %v215
    %590 = vmatprep.subr.bf16.mxu0 0
    %591 = vmatpush1.bf16.msra.mxu0 %v216
    %592 = vmatprep.subr.bf16.mxu0 0
    %593 = vmatpush1.bf16.msra.mxu0 0
    %594 = vmatprep.subr.bf16.mxu0 0
    %595 = vmatpush1.bf16.msra.mxu0 0
    %596 = vmatprep.subr.bf16.mxu0 0
    %597 = vmatpush1.bf16.msra.mxu0 0
    %598 = vmatprep.subr.bf16.mxu0 0
    %599 = vmatpush1.bf16.msra.mxu0 0
    %600 = vmatprep.subr.bf16.mxu0 0
    %601 = vmatpush1.bf16.msra.mxu0 0
    %602 = vmatprep.subr.bf16.mxu0 0
    %603 = vmatpush1.bf16.msra.mxu0 0
    %604 = vmatprep.subr.bf16.mxu0 0
    %605 = vmatpush1.bf16.msra.mxu0 0
    %606 = vmatprep.subr.bf16.mxu0 0
    %607 = vmatpush1.bf16.msra.mxu0 0
    %608 = vmatprep.subr.bf16.mxu0 0
    %609 = vmatpush1.bf16.msra.mxu0 0
    %610 = vmatprep.subr.bf16.mxu0 0
    %611 = vmatpush1.bf16.msra.mxu0 0
    %612 = vmatprep.subr.bf16.mxu0 0
    %613 = vmatpush1.bf16.msra.mxu0 0
    %614 = vmatprep.subr.bf16.mxu0 0
    %615 = vmatpush1.bf16.msra.mxu0 0
    %616 = vmatprep.subr.bf16.mxu0 0
    %617 = vmatpush1.bf16.msra.mxu0 0
    %618 = vmatprep.subr.bf16.mxu0 0
    %619 = vmatpush1.bf16.msra.mxu0 0
    %620 = vmatprep.mubr.bf16.mxu0 0
    %621 = vmatmul.mubr.bf16.gmra.mrb[0].mxu0 %v586
    %v622 = vpop.f32.mrb[0].mxu0
    %v623 = vadd.f32 0.0, %v622
    %v624 = vpop.f32.mrb[0].mxu0
    %v625 = vpop.f32.mrb[0].mxu0
    %v626 = vpop.f32.mrb[0].mxu0
    %627 = vdwg.mxu0
    %v628 = vadd.f32 %v580, %v623
    %v629 = vxor.u32 %v628, 2147483648
    %v630 = vmul.f32 %v629, 1.442695
    %v631 = vpow.pop %v630
    %v632 = vadd.f32 %v631, 1.0
    %v633 = vrcp.pop %v632
    %v634 = vmul.f32 1.0, %v633
    %v635 = vtanh.pop %v628
    %v636 = vmul.f32 %v634, %v573
    %638 = vrot.lane.b32.xlu0 %v635, 64
    %v639 = vpop.permute.xlu0 %638
    %v641 = vmul.f32 %v634, %v639
    %643 = vrot.lane.b32.xlu0 %v641, 32
    %v644 = vpop.permute.xlu0 %643
    %v646 = vadd.f32 %v636, %v644
    %v647 = vtanh.pop %v646
    %649 = vrot.lane.b32.xlu0 %v647, 64
    %v650 = vpop.permute.xlu0 %649
    %v652 = vmul.f32 %v634, %v650
    %v653 = vld [vmem:[#allocation2 + $0x30] sm:$0xff]
    %v654 = vpack.c.bf16 %v652, %v652
    %656 = vrot.lane.b32.xlu0 %v654, 32
    %v657 = vpop.permute.xlu0 %656
    %v659 = vsel %vm219, %v657, 0
    %661 = vmatprep.subr.bf16.mxu0 0
    %662 = vmatpush1.bf16.msra.mxu0 %v215
    %663 = vmatprep.subr.bf16.mxu0 0
    %664 = vmatpush1.bf16.msra.mxu0 %v216
    %665 = vmatprep.subr.bf16.mxu0 0
    %666 = vmatpush1.bf16.msra.mxu0 0
    %667 = vmatprep.subr.bf16.mxu0 0
    %668 = vmatpush1.bf16.msra.mxu0 0
    %669 = vmatprep.subr.bf16.mxu0 0
    %670 = vmatpush1.bf16.msra.mxu0 0
    %671 = vmatprep.subr.bf16.mxu0 0
    %672 = vmatpush1.bf16.msra.mxu0 0
    %673 = vmatprep.subr.bf16.mxu0 0
    %674 = vmatpush1.bf16.msra.mxu0 0
    %675 = vmatprep.subr.bf16.mxu0 0
    %676 = vmatpush1.bf16.msra.mxu0 0
    %677 = vmatprep.subr.bf16.mxu0 0
    %678 = vmatpush1.bf16.msra.mxu0 0
    %679 = vmatprep.subr.bf16.mxu0 0
    %680 = vmatpush1.bf16.msra.mxu0 0
    %681 = vmatprep.subr.bf16.mxu0 0
    %682 = vmatpush1.bf16.msra.mxu0 0
    %683 = vmatprep.subr.bf16.mxu0 0
    %684 = vmatpush1.bf16.msra.mxu0 0
    %685 = vmatprep.subr.bf16.mxu0 0
    %686 = vmatpush1.bf16.msra.mxu0 0
    %687 = vmatprep.subr.bf16.mxu0 0
    %688 = vmatpush1.bf16.msra.mxu0 0
    %689 = vmatprep.subr.bf16.mxu0 0
    %690 = vmatpush1.bf16.msra.mxu0 0
    %691 = vmatprep.subr.bf16.mxu0 0
    %692 = vmatpush1.bf16.msra.mxu0 0
    %693 = vmatprep.mubr.bf16.mxu0 0
    %694 = vmatmul.mubr.bf16.gmra.mrb[0].mxu0 %v659
    %v695 = vpop.f32.mrb[0].mxu0
    %v696 = vadd.f32 0.0, %v695
    %v697 = vpop.f32.mrb[0].mxu0
    %v698 = vpop.f32.mrb[0].mxu0
    %v699 = vpop.f32.mrb[0].mxu0
    %700 = vdwg.mxu0
    %v701 = vadd.f32 %v653, %v696
    %v702 = vxor.u32 %v701, 2147483648
    %v703 = vmul.f32 %v702, 1.442695
    %v704 = vpow.pop %v703
    %v705 = vadd.f32 %v704, 1.0
    %v706 = vrcp.pop %v705
    %v707 = vmul.f32 1.0, %v706
    %v708 = vtanh.pop %v701
    %v709 = vmul.f32 %v707, %v646
    %711 = vrot.lane.b32.xlu0 %v708, 64
    %v712 = vpop.permute.xlu0 %711
    %v714 = vmul.f32 %v707, %v712
    %716 = vrot.lane.b32.xlu0 %v714, 32
    %v717 = vpop.permute.xlu0 %716
    %v719 = vadd.f32 %v709, %v717
    %v720 = vtanh.pop %v719
    %722 = vrot.lane.b32.xlu0 %v720, 64
    %v723 = vpop.permute.xlu0 %722
    %v725 = vmul.f32 %v707, %v723
    %v726 = vld [vmem:[#allocation2 + $0x38] sm:$0xff]
    %v727 = vpack.c.bf16 %v725, %v725
    %729 = vrot.lane.b32.xlu0 %v727, 32
    %v730 = vpop.permute.xlu0 %729
    %v732 = vsel %vm219, %v730, 0
    %734 = vmatprep.subr.bf16.mxu0 0
    %735 = vmatpush1.bf16.msra.mxu0 %v215
    %736 = vmatprep.subr.bf16.mxu0 0
    %737 = vmatpush1.bf16.msra.mxu0 %v216
    %738 = vmatprep.subr.bf16.mxu0 0
    %739 = vmatpush1.bf16.msra.mxu0 0
    %740 = vmatprep.subr.bf16.mxu0 0
    %741 = vmatpush1.bf16.msra.mxu0 0
    %742 = vmatprep.subr.bf16.mxu0 0
    %743 = vmatpush1.bf16.msra.mxu0 0
    %744 = vmatprep.subr.bf16.mxu0 0
    %745 = vmatpush1.bf16.msra.mxu0 0
    %746 = vmatprep.subr.bf16.mxu0 0
    %747 = vmatpush1.bf16.msra.mxu0 0
    %748 = vmatprep.subr.bf16.mxu0 0
    %749 = vmatpush1.bf16.msra.mxu0 0
    %750 = vmatprep.subr.bf16.mxu0 0
    %751 = vmatpush1.bf16.msra.mxu0 0
    %752 = vmatprep.subr.bf16.mxu0 0
    %753 = vmatpush1.bf16.msra.mxu0 0
    %754 = vmatprep.subr.bf16.mxu0 0
    %755 = vmatpush1.bf16.msra.mxu0 0
    %756 = vmatprep.subr.bf16.mxu0 0
    %757 = vmatpush1.bf16.msra.mxu0 0
    %758 = vmatprep.subr.bf16.mxu0 0
    %759 = vmatpush1.bf16.msra.mxu0 0
    %760 = vmatprep.subr.bf16.mxu0 0
    %761 = vmatpush1.bf16.msra.mxu0 0
    %762 = vmatprep.subr.bf16.mxu0 0
    %763 = vmatpush1.bf16.msra.mxu0 0
    %764 = vmatprep.subr.bf16.mxu0 0
    %765 = vmatpush1.bf16.msra.mxu0 0
    %766 = vmatprep.mubr.bf16.mxu0 0
    %767 = vmatmul.mubr.bf16.gmra.mrb[0].mxu0 %v732
    %v768 = vpop.f32.mrb[0].mxu0
    %v769 = vadd.f32 0.0, %v768
    %v770 = vpop.f32.mrb[0].mxu0
    %v771 = vpop.f32.mrb[0].mxu0
    %v772 = vpop.f32.mrb[0].mxu0
    %773 = vdwg.mxu0
    %v774 = vadd.f32 %v726, %v769
    %v775 = vxor.u32 %v774, 2147483648
    %v776 = vmul.f32 %v775, 1.442695
    %v777 = vpow.pop %v776
    %v778 = vadd.f32 %v777, 1.0
    %v779 = vrcp.pop %v778
    %v780 = vmul.f32 1.0, %v779
    %v781 = vtanh.pop %v774
    %v782 = vmul.f32 %v780, %v719
    %784 = vrot.lane.b32.xlu0 %v781, 64
    %v785 = vpop.permute.xlu0 %784
    %v787 = vmul.f32 %v780, %v785
    %789 = vrot.lane.b32.xlu0 %v787, 32
    %v790 = vpop.permute.xlu0 %789
    %v792 = vadd.f32 %v782, %v790
    %v793 = vtanh.pop %v792
    %795 = vrot.lane.b32.xlu0 %v793, 64
    %v796 = vpop.permute.xlu0 %795
    %v798 = vmul.f32 %v780, %v796
    %v799 = vpack.c.bf16 %v798, %v798
    %v800 = vld [vmem:[%s4] sm:$0xf]
    %v801 = vld [vmem:[%s4 + $0x4] sm:$0xf]
    %v802 = vld [vmem:[%s4 + $0x8] sm:$0xf]
    %v803 = vld [vmem:[%s4 + $0xc] sm:$0xf]
    %v804 = vld [vmem:[%s5] sm:$0x1]
    %v806 = vlaneseq
    %v807 = vshrl.u32 %v806, 7
    %v808 = vsub.s32 0, %v807
    %v809 = vrot.slane %v804, %v808
    %812 = vrot.lane.b32.xlu0 %v799, 32
    %v813 = vpop.permute.xlu0 %812
    %v818 = vunpack.c.l.b16 %v800
    %v819 = vunpack.c.l.b16 %v801
    %v820 = vunpack.c.l.b16 %v802
    %v821 = vunpack.c.l.b16 %v803
    %v822 = vpack.c.b16 %v819, %v818
    %v823 = vpack.c.b16 %v821, %v820
    %v827 = vsel %vm219, %v813, 0
    %829 = vmatprep.subr.bf16.mxu0 0
    %830 = vmatpush1.bf16.msra.mxu0 %v822
    %831 = vmatprep.subr.bf16.mxu0 0
    %832 = vmatpush1.bf16.msra.mxu0 %v823
    %833 = vmatprep.subr.bf16.mxu0 0
    %834 = vmatpush1.bf16.msra.mxu0 0
    %835 = vmatprep.subr.bf16.mxu0 0
    %836 = vmatpush1.bf16.msra.mxu0 0
    %837 = vmatprep.subr.bf16.mxu0 0
    %838 = vmatpush1.bf16.msra.mxu0 0
    %839 = vmatprep.subr.bf16.mxu0 0
    %840 = vmatpush1.bf16.msra.mxu0 0
    %841 = vmatprep.subr.bf16.mxu0 0
    %842 = vmatpush1.bf16.msra.mxu0 0
    %843 = vmatprep.subr.bf16.mxu0 0
    %844 = vmatpush1.bf16.msra.mxu0 0
    %845 = vmatprep.subr.bf16.mxu0 0
    %846 = vmatpush1.bf16.msra.mxu0 0
    %847 = vmatprep.subr.bf16.mxu0 0
    %848 = vmatpush1.bf16.msra.mxu0 0
    %849 = vmatprep.subr.bf16.mxu0 0
    %850 = vmatpush1.bf16.msra.mxu0 0
    %851 = vmatprep.subr.bf16.mxu0 0
    %852 = vmatpush1.bf16.msra.mxu0 0
    %853 = vmatprep.subr.bf16.mxu0 0
    %854 = vmatpush1.bf16.msra.mxu0 0
    %855 = vmatprep.subr.bf16.mxu0 0
    %856 = vmatpush1.bf16.msra.mxu0 0
    %857 = vmatprep.subr.bf16.mxu0 0
    %858 = vmatpush1.bf16.msra.mxu0 0
    %859 = vmatprep.subr.bf16.mxu0 0
    %860 = vmatpush1.bf16.msra.mxu0 0
    %861 = vmatprep.mubr.bf16.mxu0 0
    %862 = vmatmul.mubr.bf16.gmra.mrb[0].mxu0 %v827
    %v863 = vpop.f32.mrb[0].mxu0
    %v864 = vadd.f32 %v809, %v863
    %v865 = vpop.f32.mrb[0].mxu0
    %v866 = vpop.f32.mrb[0].mxu0
    %v867 = vpop.f32.mrb[0].mxu0
    %868 = vdwg.mxu0
    %869 = vst [vmem:[#allocation3] sm:$0xff] %v864
    // Predicated region
    $region26: #{tpu_custom_call.1} parent=1 // pred_check
      _
    $region27: #{tpu_custom_call.1} parent=1 // pred_check_branch
      %871 = sbr.rel (0) target = $region29
    $region28: #{tpu_custom_call.1} parent=1 // pred_region
      %s873 = ssub.s32 128, 128
      %874 = vsyncadd [#allocation4], %s873
      %s876 = sshll.u32 [#allocation3], 4
      %s877 = int_to_ptr.vmem [resolvable:$true] %s876
      %879 = dma.vmem_to_hbm [thread:$0]  %s877, 128, %s6, [#allocation4]
    $region29: #{tpu_custom_call.1} parent=1 // pred_fallthru
      _
    // Predicated region
    $region30: #{tpu_custom_call.1} parent=1 // pred_check
      _
    $region31: #{tpu_custom_call.1} parent=1 // pred_check_branch
      %881 = sbr.rel (0) target = $region33
    $region32: #{tpu_custom_call.1} parent=1 // pred_region
      %882 = dma.done [#allocation4], 128
    $region33: #{tpu_custom_call.1} parent=1 // pred_fallthru
      _
    %883 = vsyncpa [#allocation4], 1

</llo_original>
